<compile_context>
chip_gen: v7x
topology: tpu7x:2x2x1
jax: 0.10.0
libtpu: 0.0.40
codegen_flags: <defaults>
</compile_context>

<pallas_src>
import functools

import jax
import jax.numpy as jnp
from jax.experimental import pallas as pl
from jax.experimental.pallas import tpu as pltpu


# ---------------------------------------------------------------------------
# Kernel: place one perturbed ctx token row into the aliased prompt template.
# ---------------------------------------------------------------------------
def _ctx_place_kernel(ctx_ref, tmpl_hbm_ref, out_ref):
    """Writes ctx token t, broadcast across a block of classes.

    ctx_ref      : (1, 1, D)        VMEM -- ctx token t (already ctx + eps*dir)
    tmpl_hbm_ref : (seq, n_cls, D)  HBM  -- aliased template; never touched here
                                            (prefix/suffix rows stay in HBM)
    out_ref      : (1, C_BLK, D)    VMEM -- prompts row (1 + t) for C_BLK classes
    """
    del tmpl_hbm_ref  # present only for input_output_aliases
    out_ref[...] = jnp.broadcast_to(ctx_ref[...], out_ref.shape).astype(out_ref.dtype)


# ---------------------------------------------------------------------------
# Init-time helpers (mirror register_buffer / __init__ in the PyTorch module).
# ---------------------------------------------------------------------------
def build_prompt_template(token_prefix, token_suffix, n_ctx):
    """Pre-assemble the frozen prompt template in token-major (L, N, D) layout.

    token_prefix: (n_cls, 1, D) SOS embeddings.
    token_suffix: (n_cls, n_suf, D) class-name / EOS / pad embeddings.
    Returns (1 + n_ctx + n_suf, n_cls, D); the ctx slab [1, 1+n_ctx) is zeroed
    and will be overwritten in place by every forward call.
    """
    n_cls, _, d = token_prefix.shape
    dtype = token_prefix.dtype
    pre = jnp.transpose(token_prefix, (1, 0, 2))            # (1, n_cls, D)
    suf = jnp.transpose(token_suffix, (1, 0, 2))            # (n_suf, n_cls, D)
    ctx_zeros = jnp.zeros((n_ctx, n_cls, d), dtype=dtype)
    return jnp.concatenate([pre, ctx_zeros, suf], axis=0)


def prompts_to_class_major(prompts_lnd):
    """(seq, n_cls, D) -> (n_cls, seq, D), the PyTorch module's native layout."""
    return jnp.transpose(prompts_lnd, (1, 0, 2))


def gauss_rademacher(key, shape, dtype=jnp.float32):
    """'gauss' branch of rademacher(): unit-L2-norm gaussian of given shape."""
    n = 1
    for s in shape:
        n *= s
    x = jax.random.normal(key, (n,), dtype=dtype)
    x = x / jnp.linalg.norm(x)
    return x.reshape(shape)


# ---------------------------------------------------------------------------
# Forward: fill the ctx slab of the (donated) template with ctx (+ permute).
# ---------------------------------------------------------------------------
def _fill_ctx_into_template(template, ctx, permute=None, *,
                            c_blk=None, out_block_budget_bytes=2 * (1 << 20)):
    """PromptLearner.forward (class_token_position='end'), ctx-slab-only write.

    template : (seq, n_cls, D) token-major prompt template (DONATED / aliased
               to the output).  In steady state, pass the previous call's
               output here.
    ctx      : (n_ctx, D) generic learnable context.
    permute  : (n_ctx, D) or None -- ALREADY-SCALED perturbation (eps * dir);
               None == if_permute=False path (no zeros array, no extra DMA).
    Returns prompts of shape (seq, n_cls, D) in template.dtype.
    """
    seq, n_cls, d = template.shape
    n_ctx = ctx.shape[0]
    out_dtype = template.dtype
    itemsize = jnp.dtype(out_dtype).itemsize

    # Hoisted perturbation add (tiny (n_ctx, D) op); reshape so the token axis
    # is leading and the (1, D) last-two-dims block equals the full array dims.
    ctx_pert = ctx if permute is None else ctx + permute
    ctx_pert = ctx_pert.astype(out_dtype).reshape(n_ctx, 1, d)

    # Class-block sizing: <= ~2 MiB per output block; multiple of 8 when split.
    if c_blk is None:
        c_blk = out_block_budget_bytes // max(1, d * itemsize)
    c_blk = int(max(1, c_blk))
    if c_blk >= n_cls:
        c_blk = n_cls                              # full class dim: no (8,.) constraint
    else:
        c_blk = max(8, (c_blk // 8) * 8)           # split blocks: sublane multiple of 8
        if c_blk >= n_cls:
            c_blk = n_cls
    n_cblk = pl.cdiv(n_cls, c_blk)

    out_blk_bytes = c_blk * d * itemsize
    vmem_limit = int(min(max(6 * out_blk_bytes, 8 << 20), 32 << 20))

    grid = (n_ctx, n_cblk)

    return pl.pallas_call(
        _ctx_place_kernel,
        out_shape=jax.ShapeDtypeStruct((seq, n_cls, d), out_dtype),
        grid_spec=pltpu.PrefetchScalarGridSpec(
            num_scalar_prefetch=0,
            grid=grid,
            in_specs=[
                # ctx token row t (tiny, pipelined)
                pl.BlockSpec((1, 1, d), lambda t, c: (t, 0, 0)),
                # aliased template: stays in HBM, no DMA, never read in-kernel
                pl.BlockSpec(memory_space=pl.ANY),
            ],
            # Only the ctx rows [1, 1+n_ctx) of the output are ever produced;
            # the rest of the (aliased) buffer keeps the frozen prefix/suffix.
            out_specs=pl.BlockSpec((1, c_blk, d), lambda t, c: (1 + t, c, 0)),
        ),
        input_output_aliases={1: 0},
        compiler_params=pltpu.CompilerParams(
            dimension_semantics=("parallel", "parallel"),
            vmem_limit_bytes=vmem_limit,
        ),
    )(ctx_pert, template)


# jit + donation so the template buffer is truly reused in place (no copy).
prompt_learner_forward = jax.jit(
    _fill_ctx_into_template,
    donate_argnums=(0,),
    static_argnames=("c_blk", "out_block_budget_bytes"),
)


# ---------------------------------------------------------------------------
# Demo / correctness check.
# ---------------------------------------------------------------------------
if __name__ == "__main__":
    # Small, CLIP-shaped synthetic configuration.
    n_cls = 8       # number of classnames
    n_ctx = 4       # number of context tokens
    ctx_dim = 128   # embedding dim (lane-friendly)
    seq_len = 16    # total tokenized prompt length
    n_suf = seq_len - 1 - n_ctx
    emb_dtype = jnp.bfloat16   # frozen embeddings / prompts in bf16 (bandwidth)

    key = jax.random.PRNGKey(0)
    k_ctx, k_pre, k_suf, k_perm = jax.random.split(key, 4)

    # Module __init__ equivalents:
    #   ctx ~ N(0, 0.02) (generic context, CSC=False); frozen token embeddings.
    ctx = 0.02 * jax.random.normal(k_ctx, (n_ctx, ctx_dim), dtype=jnp.float32)
    token_prefix = jax.random.normal(k_pre, (n_cls, 1, ctx_dim)).astype(emb_dtype)
    token_suffix = jax.random.normal(k_suf, (n_cls, n_suf, ctx_dim)).astype(emb_dtype)

    # One-time template assembly (init cost; thereafter outputs are reused).
    template = build_prompt_template(token_prefix, token_suffix, n_ctx)

    # forward(if_permute=True, permute_scale=True), estim_type='gauss':
    #   epsilon_ = max(1 / prod(ctx.shape), 0.001)
    eps = max(1.0 / (n_ctx * ctx_dim), 0.001)
    permute_ = eps * gauss_rademacher(k_perm, (n_ctx, ctx_dim), dtype=jnp.float32)

    # --- call 1: if_permute=True (template donated) ---
    prompts = prompt_learner_forward(template, ctx, permute_)
    prompts = jax.block_until_ready(prompts)
    assert prompts.shape == (seq_len, n_cls, ctx_dim)

    ctx_pert = (ctx + permute_).astype(emb_dtype)
    ref_ncld = jnp.concatenate(
        [token_prefix,
         jnp.broadcast_to(ctx_pert[None], (n_cls, n_ctx, ctx_dim)),
         token_suffix], axis=1)                      # module-native (n_cls, seq, D)
    got_ncld = prompts_to_class_major(prompts)
    assert jnp.allclose(got_ncld.astype(jnp.float32),
                        ref_ncld.astype(jnp.float32), atol=1e-6), "mismatch (permute)"

    # --- call 2: if_permute=False, reusing call 1's output as the template ---
    # (steady-state pattern: only the ctx slab is rewritten in place)
    prompts2 = prompt_learner_forward(prompts, ctx, None)   # `prompts` donated here
    prompts2 = jax.block_until_ready(prompts2)

    ref2_ncld = jnp.concatenate(
        [token_prefix,
         jnp.broadcast_to(ctx.astype(emb_dtype)[None], (n_cls, n_ctx, ctx_dim)),
         token_suffix], axis=1)
    got2_ncld = prompts_to_class_major(prompts2)
    assert jnp.allclose(got2_ncld.astype(jnp.float32),
                        ref2_ncld.astype(jnp.float32), atol=1e-6), "mismatch (no permute)"

    print("KERNEL_OK")
</pallas_src>

<mosaic_0001>
module attributes {stable_mosaic.version = 11 : i64} {
  func.func @_ctx_place_kernel(%arg0: i32, %arg1: i32, %arg2: memref<1x1x128xbf16, #tpu.memory_space<vmem>>, %arg3: memref<16x8x128xbf16, #tpu.memory_space<any>>, %arg4: memref<1x8x128xbf16, #tpu.memory_space<vmem>>) attributes {dimension_semantics = [#tpu.dimension_semantics<parallel>, #tpu.dimension_semantics<parallel>], iteration_bounds = array<i64: 4, 1>, scalar_prefetch = 0 : i64, scratch_operands = 0 : i64, tpu.core_type = #tpu.core_type<tc>, window_params = [{transform_indices = @transform_0, window_bounds = array<i64: 1, 1, 128>}, {}, {transform_indices = @transform_2, window_bounds = array<i64: 1, 8, 128>}]} {
    %c0 = arith.constant 0 : index
    %c0_0 = arith.constant 0 : index
    %c0_1 = arith.constant 0 : index
    %0 = vector.load %arg2[%c0, %c0_0, %c0_1] : memref<1x1x128xbf16, #tpu.memory_space<vmem>>, vector<1x1x128xbf16>
    %1 = vector.shape_cast %0 : vector<1x1x128xbf16> to vector<1x1x128xbf16>
    %2 = vector.broadcast %1 : vector<1x1x128xbf16> to vector<1x8x128xbf16>
    %c0_2 = arith.constant 0 : index
    %c0_3 = arith.constant 0 : index
    %c0_4 = arith.constant 0 : index
    %3 = vector.load %arg4[%c0_2, %c0_3, %c0_4] : memref<1x8x128xbf16, #tpu.memory_space<vmem>>, vector<1x8x128xbf16>
    tpu.vector_store %arg4[%c0_2, %c0_3, %c0_4], %2 {strides = array<i32>} : memref<1x8x128xbf16, #tpu.memory_space<vmem>>, vector<1x8x128xbf16>,
    return
  }
  func.func @transform_0(%arg0: i32, %arg1: i32) -> (i32, i32, i32) {
    %c0_i32 = arith.constant 0 : i32
    %c0_i32_0 = arith.constant 0 : i32
    %c0_i32_1 = arith.constant 0 : i32
    return %arg0, %c0_i32, %c0_i32_0 : i32, i32, i32
  }
  func.func @transform_2(%arg0: i32, %arg1: i32) -> (i32, i32, i32) {
    %c1_i32 = arith.constant 1 : i32
    %0 = arith.addi %c1_i32, %arg0 : i32
    %c0_i32 = arith.constant 0 : i32
    %c0_i32_0 = arith.constant 0 : i32
    return %0, %arg1, %c0_i32 : i32, i32, i32
  }
}

</mosaic_0001>

<llo_original>
// kernel: _fill_ctx_into_template.1
$region0: #{_fill_ctx_into_template.1}
  #allocation0 [shape = 'u32[]', space=smem, size = 0x4, offset = 0x4, fixed_abs, tag = 'smem constant byte address 0x4 - core index']
  #allocation1 [shape = 'u32[144,128]{1,0:T(1,128)}', space=vmem, size = 0x12000, scoped, tag = 'internal scratch']
  %s0 = inlined_call_operand.vmem [shape: bf16[4,1,128], index: 0, kind: input, shape index: {}]
  %s1 = inlined_call_operand.hbm [shape: bf16[16,8,128], index: 1, kind: input, shape index: {}, may-alias: {1,2}]
  %s2 = inlined_call_operand.hbm [shape: bf16[16,8,128], index: 2, kind: output, shape index: {}, may-alias: {1,2}]
  %s3 = sld [smem:[#allocation0]]
  $region37: #{_fill_ctx_into_template.1} parent=0
    _
  %s5 = ssub.s32 1, %s3
  %s6 = scalar_select 0, %s5, %s3
  $region1: #{_fill_ctx_into_template.1} parent=0
    #allocation2 [shape = 'u8[4096]{0}', space=vmem, size = 0x1000, scoped, tag = 'output window, operand 0']
    #allocation3 [shape = 's32[2]{0}', space=sflag, size = 0x8, scoped, tag = 'scoped memory for _fill_ctx_into_template.1']
    %7 = vsyncpa [#allocation3], 0
    %s8 = scalar_lea.sflag [#allocation3], 1
    %9 = vsyncpa %s8, 0
    loop: start=0, step=1, limit=6
    $region2: #{_fill_ctx_into_template.1} parent=1 // loop_pre_header
      _
    $region3: #{_fill_ctx_into_template.1} parent=1 // loop_header
      %s11 = sphi 0, %s15
      %p12 = scmp.ge.s32.totalorder %s11, 6
      %s18 = sphi 0, %s30
      %s19 = sphi 0, %s26
      %s20 = sphi 0, %s18
      %s21 = sphi 0, %s19
      %s22 = sphi 0, %s20
      %s23 = sphi 0, %s21
      %s33 = sphi 0, %s35
      %s36 = sphi 0, %s33
      %s37 = sphi 0, %s36
      %s53 = sphi 0, %s37
      %s63 = sphi 0, %s65
      %s66 = sphi 0, %s63
      %s67 = sphi 0, %s66
      %s83 = sphi 0, %s67
    $region4: #{_fill_ctx_into_template.1} parent=1 // loop_header_branch
      %14 = sbr.rel (%p12) target = $region8
    $region5: #{_fill_ctx_into_template.1} parent=1 // loop_body
      %s16 = ssub.s32 %s11, 1
      %s17 = ssub.s32 %s11, 2
      %s24 = sadd.s32 1, %s19
      %p25 = scmp.ge.s32.totalorder %s24, 1
      %s26 = scalar_select %p25, 0, %s24
      %s27 = sadd.s32 1, %s18
      %s28 = scalar_select %p25, %s27, %s18
      %p29 = scmp.ge.s32.totalorder %s28, 4
      %s30 = scalar_select %p29, 0, %s28
      %s31 = ssub.s32 %s18, %s30
      %p32 = scmp.eq.s32.totalorder %s31, 0
      %s34 = sadd.s32 %s33, 1
      %s35 = scalar_select %p32, %s33, %s34
      %p38 = pneg %p32
      %p39 = scmp.eq.s32.totalorder %s11, 3
      %p40 = por %p38, %p39
      %p41 = scmp.ne.s32.totalorder %s33, %s36
      %p42 = scmp.eq.s32.totalorder %s11, 0
      %p43 = por %p41, %p42
      %p44 = scmp.ne.s32.totalorder %s33, %s36
      %p45 = scmp.eq.s32.totalorder %s16, 3
      %p46 = por %p44, %p45
      %p47 = scmp.ne.s32.totalorder %s36, %s37
      %p48 = scmp.eq.s32.totalorder %s16, 0
      %p49 = por %p47, %p48
      %p50 = scmp.ne.s32.totalorder %s36, %s37
      %p51 = scmp.eq.s32.totalorder %s17, 3
      %p52 = por %p50, %p51
      %p54 = scmp.ne.s32.totalorder %s37, %s53
      %p55 = scmp.eq.s32.totalorder %s17, 0
      %p56 = por %p54, %p55
      %s57 = sadd.s32 %s18, 1
      %s58 = sadd.s32 %s30, 1
      %s59 = ssub.s32 %s57, %s58
      %s60 = ssub.s32 %s19, %s26
      %s61 = sor.u32 %s59, %s60
      %p62 = scmp.eq.s32.totalorder %s61, 0
      %s64 = sadd.s32 %s63, 1
      %s65 = scalar_select %p62, %s63, %s64
      %p68 = pneg %p62
      %p69 = scmp.eq.s32.totalorder %s11, 3
      %p70 = por %p68, %p69
      %p71 = scmp.ne.s32.totalorder %s63, %s66
      %p72 = scmp.eq.s32.totalorder %s11, 0
      %p73 = por %p71, %p72
      %p74 = scmp.ne.s32.totalorder %s63, %s66
      %p75 = scmp.eq.s32.totalorder %s16, 3
      %p76 = por %p74, %p75
      %p77 = scmp.ne.s32.totalorder %s66, %s67
      %p78 = scmp.eq.s32.totalorder %s16, 0
      %p79 = por %p77, %p78
      %p80 = scmp.ne.s32.totalorder %s66, %s67
      %p81 = scmp.eq.s32.totalorder %s17, 3
      %p82 = por %p80, %p81
      %p84 = scmp.ne.s32.totalorder %s67, %s83
      %p85 = scmp.eq.s32.totalorder %s17, 0
      %p86 = por %p84, %p85
      %p87 = scmp.le.s32.totalorder 1, %s11
      %p88 = scmp.lt.s32.totalorder %s11, 5
      %p89 = pnand %p87, %p88
      %p90 = pneg %p89
      // Predicated region
      $region9: #{_fill_ctx_into_template.1} parent=5 // pred_check
        _
      $region10: #{_fill_ctx_into_template.1} parent=5 // pred_check_branch
        %92 = sbr.rel (%p89) target = $region12
      $region11: #{_fill_ctx_into_template.1} parent=5 // pred_region
        %s93 = ssub.s32 %s11, 1
      $region12: #{_fill_ctx_into_template.1} parent=5 // pred_fallthru
        _
      %p94 = scmp.lt.s32.totalorder %s11, 4
      // Predicated region
      $region13: #{_fill_ctx_into_template.1} parent=5 // pred_check
        %p95 = pneg %p94
      $region14: #{_fill_ctx_into_template.1} parent=5 // pred_check_branch
        %97 = sbr.rel (%p95) target = $region16
      $region15: #{_fill_ctx_into_template.1} parent=5 // pred_region
        // Predicated region
        $region17: #{_fill_ctx_into_template.1} parent=15 // pred_check
          %p98 = pneg %p43
        $region18: #{_fill_ctx_into_template.1} parent=15 // pred_check_branch
          %100 = sbr.rel (%p98) target = $region20
        $region19: #{_fill_ctx_into_template.1} parent=15 // pred_region
          %p101 = scmp.lt.s32.totalorder %s18, 3
          %s102 = scalar_select %p101, %s18, 3
          %s103 = scalar_lea.vmem %s0, %s102
        $region20: #{_fill_ctx_into_template.1} parent=15 // pred_fallthru
          _
      $region16: #{_fill_ctx_into_template.1} parent=5 // pred_fallthru
        _
      %p104 = scmp.le.s32.totalorder 1, %s11
      %p105 = scmp.lt.s32.totalorder %s11, 5
      %p106 = pnand %p104, %p105
      %p107 = pneg %p106
      // Predicated region
      $region21: #{_fill_ctx_into_template.1} parent=5 // pred_check
        _
      $region22: #{_fill_ctx_into_template.1} parent=5 // pred_check_branch
        %109 = sbr.rel (%p106) target = $region24
      $region23: #{_fill_ctx_into_template.1} parent=5 // pred_region
        %s110 = ssub.s32 %s11, 1
        %p111 = scmp.lt.s32.totalorder %s20, 3
        %s112 = scalar_select %p111, %s20, 3
        %s113 = scalar_lea.vmem %s0, %s112
        %p114 = pneg %p49
        %p115 = pneg %p46
        %p116 = pneg %p79
        %p117 = pneg %p76
        %s118 = sand.u32 %s66, 1
        %s119 = scalar_lea.sflag [#allocation3], %s118
        %s120 = sand.u32 %s66, 1
        %s121 = smul.addr %s120, 4
        %s122 = scalar_lea.vmem [#allocation2], %s121
        %p123 = scmp.lt.s32.totalorder %s20, 3
        %s124 = scalar_select %p123, %s20, 3
        %s125 = scalar_lea.vmem %s0, %s124
        %s126 = sadd.s32 %s20, 1
        %v127 = vld [vmem:[%s125] sm:$0x1]
        %v129 = vpack.i.b16 %v127, %v127
        %v131 = vlaneseq
        %v132 = vshrl.u32 %v131, 7
        %v133 = vsub.s32 0, %v132
        %v134 = vrot.slane %v129, %v133
        %135 = vst [vmem:[%s122] sm:$0xf] %v134
        %s136 = sand.u32 %s66, 1
        %s137 = scalar_lea.sflag [#allocation3], %s136
        %s138 = sand.u32 %s66, 1
        %s139 = smul.addr %s138, 4
        %s140 = scalar_lea.vmem [#allocation2], %s139
        // Predicated region
        $region25: #{_fill_ctx_into_template.1} parent=23 // pred_check
          %p141 = pneg %p76
        $region26: #{_fill_ctx_into_template.1} parent=23 // pred_check_branch
          %143 = sbr.rel (%p141) target = $region28
        $region27: #{_fill_ctx_into_template.1} parent=23 // pred_region
          %s144 = sadd.s32 %s20, 1
          %s146 = ssub.s32 64, 64
          %147 = vsyncadd %s137, %s146
          %s148 = sadd.s32 %s21, %s144
          %s149 = smul.addr %s148, 64
          %s150 = scalar_lea.hbm %s2, %s149
          %s152 = sshll.u32 %s140, 4
          %s153 = int_to_ptr.vmem [resolvable:$true] %s152
          %155 = dma.vmem_to_hbm [thread:$0]  %s153, 64, %s150, %s137
        $region28: #{_fill_ctx_into_template.1} parent=23 // pred_fallthru
          _
      $region24: #{_fill_ctx_into_template.1} parent=5 // pred_fallthru
        _
      %p156 = scmp.le.s32.totalorder 2, %s11
      // Predicated region
      $region29: #{_fill_ctx_into_template.1} parent=5 // pred_check
        %p157 = pneg %p156
      $region30: #{_fill_ctx_into_template.1} parent=5 // pred_check_branch
        %159 = sbr.rel (%p157) target = $region32
      $region31: #{_fill_ctx_into_template.1} parent=5 // pred_region
        %s160 = ssub.s32 %s11, 2
        // Predicated region
        $region33: #{_fill_ctx_into_template.1} parent=31 // pred_check
          %p161 = pneg %p82
        $region34: #{_fill_ctx_into_template.1} parent=31 // pred_check_branch
          %163 = sbr.rel (%p161) target = $region36
        $region35: #{_fill_ctx_into_template.1} parent=31 // pred_region
          %s164 = sand.u32 %s67, 1
          %s165 = scalar_lea.sflag [#allocation3], %s164
          %s166 = sand.u32 %s67, 1
          %s167 = smul.addr %s166, 4
          %s168 = scalar_lea.vmem [#allocation2], %s167
          %169 = dma.done %s165, 64
        $region36: #{_fill_ctx_into_template.1} parent=31 // pred_fallthru
          _
      $region32: #{_fill_ctx_into_template.1} parent=5 // pred_fallthru
        _
    $region6: #{_fill_ctx_into_template.1} parent=1 // loop_footer
      %s15 = sadd.s32 1, %s11
    $region7: #{_fill_ctx_into_template.1} parent=1 // loop_footer_branch
      %10 = sbr.rel target = $region3
    $region8: #{_fill_ctx_into_template.1} parent=1 // loop_exit
      _
    %170 = vsyncpa [#allocation3], 1
    %s171 = scalar_lea.sflag [#allocation3], 1
    %172 = vsyncpa %s171, 1

</llo_original>
